<compile_context>
chip_gen: v6e
topology: v6e:2x2x1
jax: 0.10.0
libtpu: 0.0.40
codegen_flags: <defaults>
</compile_context>

<pallas_src>
import functools

import jax
import jax.numpy as jnp
from jax import lax
from jax.experimental import pallas as pl
from jax.experimental.pallas import tpu as pltpu


# ----------------------------------------------------------------------------
# Fused kernel: masked-sum sentence pooling (T-tiled) + classifier head
# ----------------------------------------------------------------------------
def _pooling_classifier_kernel(n_tok_ref, enc_ref, wt_ref, b_ref,
                               pooled_ref, logits_ref, acc_ref):
    """One (B-tile, T-tile) grid step.

    n_tok_ref : (B,)        i32  SMEM  scalar-prefetched #sub-tokens per sentence
    enc_ref   : (bt, tt, H) f32  VMEM  encodings tile
    wt_ref    : (H, O)      f32  VMEM  pre-transposed classifier weight
    b_ref     : (1, O)      f32  VMEM  classifier bias
    pooled_ref: (bt, H)     f32  VMEM  sentence_pooled_output tile
    logits_ref: (bt, O)     f32  VMEM  logits tile
    acc_ref   : (bt, H)     f32  VMEM  scratch accumulator (lives across T-tiles)
    """
    bi = pl.program_id(0)
    k = pl.program_id(1)
    nk = pl.num_programs(1)
    bt, tt, _ = enc_ref.shape

    @pl.when(k == 0)
    def _():
        acc_ref[...] = jnp.zeros_like(acc_ref)

    # Global token index of every position in this T-tile, and its batch row.
    tok = lax.broadcasted_iota(jnp.int32, (bt, tt, 1), 1) + k * tt
    row = lax.broadcasted_iota(jnp.int32, (bt, tt, 1), 0)

    # Per-row token count (scalar reads from SMEM; bt is small and static).
    limit = jnp.zeros((bt, tt, 1), jnp.int32)
    for r in range(bt):
        limit = jnp.where(row == r, n_tok_ref[bi * bt + r], limit)

    # Valid sub-tokens are positions 1 .. n_tok (skip [CLS], exclude [SEP]/pad);
    # also masks any out-of-range rows of a partial tail tile.
    mask = (tok >= 1) & (tok <= limit)
    acc_ref[...] += jnp.sum(jnp.where(mask, enc_ref[...], 0.0), axis=1)

    @pl.when(k == nk - 1)
    def _():
        # Exact-weight sum -> scale by 1/n in f32 (clamped so n==0 gives zeros).
        rrow = lax.broadcasted_iota(jnp.int32, (bt, 1), 0)
        nvec = jnp.zeros((bt, 1), jnp.int32)
        for r in range(bt):
            nvec = jnp.where(rrow == r, n_tok_ref[bi * bt + r], nvec)
        pooled = acc_ref[...] / jnp.maximum(nvec, 1).astype(jnp.float32)
        pooled_ref[...] = pooled
        logits_ref[...] = (
            jnp.dot(pooled, wt_ref[...], preferred_element_type=jnp.float32)
            + b_ref[...]
        )


@functools.partial(jax.jit, static_argnames=("t_tile",))
def _forward_core(bert_encodings, n_tok, lin_w, lin_b, *, t_tile=512):
    """bert_encodings: (B,T,H) f32; n_tok: (B,) i32; lin_w: (O,H); lin_b: (O,)."""
    B, T, H = bert_encodings.shape
    O = lin_w.shape[0]

    # --- tiling -------------------------------------------------------------
    # B-tile ("parallel" axis): whole batch if small, otherwise chunks of 8.
    bt = B if (B <= 8 or B % 8 != 0) else 8
    nb = B // bt
    # T-tile ("arbitrary"/reduction axis, last): multiple of 8 or full T.
    tt = T if t_tile >= T else max(8, (t_tile // 8) * 8)
    nt = pl.cdiv(T, tt)

    # VMEM budget: double-buffered enc tile + outputs/weights + headroom,
    # kept well below v7x's 64 MiB physical VMEM (16 MiB floor for v5e default).
    enc_tile_bytes = bt * tt * H * bert_encodings.dtype.itemsize
    vmem_limit = int(min(max(4 * enc_tile_bytes, 16 * 1024 ** 2), 48 * 1024 ** 2))

    # One tiny, static transpose of the classifier weight outside the kernel.
    wt = lin_w.T.astype(jnp.float32)                 # (H, O)
    b2 = lin_b.reshape(1, O).astype(jnp.float32)     # (1, O)

    grid_spec = pltpu.PrefetchScalarGridSpec(
        num_scalar_prefetch=1,
        grid=(nb, nt),
        in_specs=[
            pl.BlockSpec((bt, tt, H), lambda i, k, n: (i, k, 0)),
            pl.BlockSpec((H, O), lambda i, k, n: (0, 0)),
            pl.BlockSpec((1, O), lambda i, k, n: (0, 0)),
        ],
        out_specs=[
            pl.BlockSpec((bt, H), lambda i, k, n: (i, 0)),
            pl.BlockSpec((bt, O), lambda i, k, n: (i, 0)),
        ],
        scratch_shapes=[pltpu.VMEM((bt, H), jnp.float32)],
    )

    pooled, logits = pl.pallas_call(
        _pooling_classifier_kernel,
        out_shape=(
            jax.ShapeDtypeStruct((B, H), jnp.float32),
            jax.ShapeDtypeStruct((B, O), jnp.float32),
        ),
        grid_spec=grid_spec,
        compiler_params=pltpu.CompilerParams(
            dimension_semantics=("parallel", "arbitrary"),
            vmem_limit_bytes=vmem_limit,
        ),
    )(n_tok, bert_encodings.astype(jnp.float32), wt, b2)

    return pooled, logits


# ----------------------------------------------------------------------------
# custom_forward equivalent (inference / eval mode: dropout = identity)
# ----------------------------------------------------------------------------
def sentence_bert_forward(bert_encodings, batch_splits, lin_w, lin_b,
                          targets=None, t_tile=512):
    n_tok = jnp.asarray([sum(s) for s in batch_splits], dtype=jnp.int32)
    pooled, logits = _forward_core(bert_encodings, n_tok, lin_w, lin_b,
                                   t_tile=t_tile)
    out = {"sentence_pooled_output": pooled, "logits": logits}
    if targets is not None:
        # CrossEntropyLoss(reduction='mean')  (plain-JAX glue, not a kernel)
        logp = jax.nn.log_softmax(logits, axis=-1)
        out["loss"] = -jnp.mean(logp[jnp.arange(logits.shape[0]), targets])
    return out


# ----------------------------------------------------------------------------
# main
# ----------------------------------------------------------------------------
if __name__ == "__main__":
    key = jax.random.PRNGKey(0)
    k_enc, k_w, k_b = jax.random.split(key, 3)

    # small shapes consistent with the module's forward:
    B = 2          # batch of sentences
    T = 16         # padded sub-token sequence length (incl. CLS/SEP)
    H = 32         # BERT hidden size (bertmodule_outdim)
    OUT_DIM = 4    # classifier out_dim

    # synthetic "BERT" sequence encodings (stand-in for AutoModel forward)
    bert_encodings = jax.random.normal(k_enc, (B, T, H), dtype=jnp.float32)

    # deterministic Linear(hidden -> out_dim) parameters (torch layout: (O, H))
    lin_w = 0.02 * jax.random.normal(k_w, (OUT_DIM, H), dtype=jnp.float32)
    lin_b = 0.01 * jax.random.normal(k_b, (OUT_DIM,), dtype=jnp.float32)

    # sub-tokens per word, per sentence (sum(splits)+2 <= T)
    batch_splits = [[2, 1, 3, 1, 2], [1, 2, 2, 1]]
    targets = jnp.array([1, 3], dtype=jnp.int32)

    # t_tile=8 so the toy shapes exercise the T-tiled accumulator pipeline.
    out = sentence_bert_forward(bert_encodings, batch_splits, lin_w, lin_b,
                                targets, t_tile=8)
    jax.block_until_ready(out["sentence_pooled_output"])
    jax.block_until_ready(out["logits"])
    jax.block_until_ready(out["loss"])

    # ---- self-check against a plain-JAX f32 reference ----
    ref_pooled = jnp.stack(
        [
            jnp.mean(bert_encodings[b, 1: 1 + sum(batch_splits[b]), :], axis=0)
            for b in range(B)
        ]
    )
    ref_logits = ref_pooled @ lin_w.T + lin_b
    ref_logp = jax.nn.log_softmax(ref_logits, axis=-1)
    ref_loss = -jnp.mean(ref_logp[jnp.arange(B), targets])

    assert out["sentence_pooled_output"].shape == (B, H)
    assert out["logits"].shape == (B, OUT_DIM)
    # all-f32 path now -> tight tolerance
    assert jnp.allclose(out["sentence_pooled_output"], ref_pooled,
                        atol=1e-4, rtol=1e-4)
    assert jnp.allclose(out["logits"], ref_logits, atol=1e-4, rtol=1e-4)
    assert jnp.allclose(out["loss"], ref_loss, atol=1e-4, rtol=1e-4)

    print("KERNEL_OK")
</pallas_src>

<mosaic_0001>
module attributes {stable_mosaic.version = 11 : i64} {
  func.func @_pooling_classifier_kernel(%arg0: i32, %arg1: i32, %arg2: memref<2xi32, #tpu.memory_space<smem>>, %arg3: memref<2x8x32xf32, #tpu.memory_space<vmem>>, %arg4: memref<32x4xf32, #tpu.memory_space<vmem>>, %arg5: memref<1x4xf32, #tpu.memory_space<vmem>>, %arg6: memref<2x32xf32, #tpu.memory_space<vmem>>, %arg7: memref<2x4xf32, #tpu.memory_space<vmem>>, %arg8: memref<2x32xf32, #tpu.memory_space<vmem>>) attributes {dimension_semantics = [#tpu.dimension_semantics<parallel>, #tpu.dimension_semantics<arbitrary>], iteration_bounds = array<i64: 1, 2>, scalar_prefetch = 1 : i64, scratch_operands = 1 : i64, tpu.core_type = #tpu.core_type<tc>, window_params = [{transform_indices = @transform_0, window_bounds = array<i64: 2, 8, 32>}, {pipeline_mode = #tpu.pipeline_mode<synchronous>, transform_indices = @transform_1, window_bounds = array<i64: 32, 4>}, {pipeline_mode = #tpu.pipeline_mode<synchronous>, transform_indices = @transform_2, window_bounds = array<i64: 1, 4>}, {transform_indices = @transform_3, window_bounds = array<i64: 2, 32>}, {transform_indices = @transform_4, window_bounds = array<i64: 2, 4>}]} {
    %c0_i32 = arith.constant 0 : i32
    %0 = arith.cmpi eq, %arg1, %c0_i32 : i32
    %1 = arith.extui %0 : i1 to i32
    %c0_i32_0 = arith.constant 0 : i32
    %2 = arith.cmpi ne, %1, %c0_i32_0 : i32
    scf.if %2 {
      %cst_16 = arith.constant 0.000000e+00 : f32
      %41 = vector.broadcast %cst_16 : f32 to vector<2x32xf32>
      %c0_17 = arith.constant 0 : index
      %c0_18 = arith.constant 0 : index
      %42 = vector.load %arg8[%c0_17, %c0_18] : memref<2x32xf32, #tpu.memory_space<vmem>>, vector<2x32xf32>
      tpu.vector_store %arg8[%c0_17, %c0_18], %41 {strides = array<i32>} : memref<2x32xf32, #tpu.memory_space<vmem>>, vector<2x32xf32>,
    } else {
    }
    %3 = tpu.iota {dimensions = array<i32: 1>} : vector<2x8x1xi32>
    %c8_i32 = arith.constant 8 : i32
    %4 = arith.muli %arg1, %c8_i32 : i32
    %5 = vector.broadcast %4 : i32 to vector<2x8x1xi32>
    %6 = arith.addi %3, %5 : vector<2x8x1xi32>
    %7 = tpu.iota {dimensions = array<i32: 0>} : vector<2x8x1xi32>
    %c0_i32_1 = arith.constant 0 : i32
    %8 = vector.broadcast %c0_i32_1 : i32 to vector<2x8x1xi32>
    %c0_i32_2 = arith.constant 0 : i32
    %9 = vector.broadcast %c0_i32_2 : i32 to vector<2x8x1xi32>
    %10 = arith.cmpi eq, %7, %9 : vector<2x8x1xi32>
    %c2_i32 = arith.constant 2 : i32
    %11 = arith.muli %arg0, %c2_i32 : i32
    %c0_i32_3 = arith.constant 0 : i32
    %12 = arith.addi %11, %c0_i32_3 : i32
    %13 = arith.index_cast %12 : i32 to index
    %14 = memref.load %arg2[%13] : memref<2xi32, #tpu.memory_space<smem>>
    %15 = vector.broadcast %14 : i32 to vector<2x8x1xi32>
    %16 = arith.select %10, %15, %8 : vector<2x8x1xi1>, vector<2x8x1xi32>
    %c1_i32 = arith.constant 1 : i32
    %17 = vector.broadcast %c1_i32 : i32 to vector<2x8x1xi32>
    %18 = arith.cmpi eq, %7, %17 : vector<2x8x1xi32>
    %c2_i32_4 = arith.constant 2 : i32
    %19 = arith.muli %arg0, %c2_i32_4 : i32
    %c1_i32_5 = arith.constant 1 : i32
    %20 = arith.addi %19, %c1_i32_5 : i32
    %21 = arith.index_cast %20 : i32 to index
    %22 = memref.load %arg2[%21] : memref<2xi32, #tpu.memory_space<smem>>
    %23 = vector.broadcast %22 : i32 to vector<2x8x1xi32>
    %24 = arith.select %18, %23, %16 : vector<2x8x1xi1>, vector<2x8x1xi32>
    %c1_i32_6 = arith.constant 1 : i32
    %25 = vector.broadcast %c1_i32_6 : i32 to vector<2x8x1xi32>
    %26 = arith.cmpi sge, %6, %25 : vector<2x8x1xi32>
    %27 = arith.cmpi sle, %6, %24 : vector<2x8x1xi32>
    %28 = arith.andi %26, %27 : vector<2x8x1xi1>
    %c0 = arith.constant 0 : index
    %c0_7 = arith.constant 0 : index
    %29 = vector.load %arg8[%c0, %c0_7] : memref<2x32xf32, #tpu.memory_space<vmem>>, vector<2x32xf32>
    %c0_8 = arith.constant 0 : index
    %c0_9 = arith.constant 0 : index
    %c0_10 = arith.constant 0 : index
    %30 = vector.load %arg3[%c0_8, %c0_9, %c0_10] : memref<2x8x32xf32, #tpu.memory_space<vmem>>, vector<2x8x32xf32>
    %cst = arith.constant 0.000000e+00 : f32
    %31 = vector.shape_cast %28 : vector<2x8x1xi1> to vector<2x8x1xi1>
    %32 = vector.broadcast %31 : vector<2x8x1xi1> to vector<2x8x32xi1>
    %33 = vector.broadcast %cst : f32 to vector<2x8x32xf32>
    %34 = arith.select %32, %30, %33 : vector<2x8x32xi1>, vector<2x8x32xf32>
    %cst_11 = arith.constant dense<0.000000e+00> : vector<2x32xf32>
    %35 = vector.multi_reduction <add>, %34, %cst_11 [1] : vector<2x8x32xf32> to vector<2x32xf32>
    %36 = arith.addf %29, %35 : vector<2x32xf32>
    %c0_12 = arith.constant 0 : index
    %c0_13 = arith.constant 0 : index
    %37 = vector.load %arg8[%c0_12, %c0_13] : memref<2x32xf32, #tpu.memory_space<vmem>>, vector<2x32xf32>
    tpu.vector_store %arg8[%c0_12, %c0_13], %36 {strides = array<i32>} : memref<2x32xf32, #tpu.memory_space<vmem>>, vector<2x32xf32>,
    %c1_i32_14 = arith.constant 1 : i32
    %38 = arith.cmpi eq, %arg1, %c1_i32_14 : i32
    %39 = arith.extui %38 : i1 to i32
    %c0_i32_15 = arith.constant 0 : i32
    %40 = arith.cmpi ne, %39, %c0_i32_15 : i32
    scf.if %40 {
      %41 = tpu.iota {dimensions = array<i32: 0>} : vector<2x1xi32>
      %c0_i32_16 = arith.constant 0 : i32
      %42 = vector.broadcast %c0_i32_16 : i32 to vector<2x1xi32>
      %c0_i32_17 = arith.constant 0 : i32
      %43 = vector.broadcast %c0_i32_17 : i32 to vector<2x1xi32>
      %44 = arith.cmpi eq, %41, %43 : vector<2x1xi32>
      %c2_i32_18 = arith.constant 2 : i32
      %45 = arith.muli %arg0, %c2_i32_18 : i32
      %c0_i32_19 = arith.constant 0 : i32
      %46 = arith.addi %45, %c0_i32_19 : i32
      %47 = arith.index_cast %46 : i32 to index
      %48 = memref.load %arg2[%47] : memref<2xi32, #tpu.memory_space<smem>>
      %49 = vector.broadcast %48 : i32 to vector<2x1xi32>
      %50 = arith.select %44, %49, %42 : vector<2x1xi1>, vector<2x1xi32>
      %c1_i32_20 = arith.constant 1 : i32
      %51 = vector.broadcast %c1_i32_20 : i32 to vector<2x1xi32>
      %52 = arith.cmpi eq, %41, %51 : vector<2x1xi32>
      %c2_i32_21 = arith.constant 2 : i32
      %53 = arith.muli %arg0, %c2_i32_21 : i32
      %c1_i32_22 = arith.constant 1 : i32
      %54 = arith.addi %53, %c1_i32_22 : i32
      %55 = arith.index_cast %54 : i32 to index
      %56 = memref.load %arg2[%55] : memref<2xi32, #tpu.memory_space<smem>>
      %57 = vector.broadcast %56 : i32 to vector<2x1xi32>
      %58 = arith.select %52, %57, %50 : vector<2x1xi1>, vector<2x1xi32>
      %c0_23 = arith.constant 0 : index
      %c0_24 = arith.constant 0 : index
      %59 = vector.load %arg8[%c0_23, %c0_24] : memref<2x32xf32, #tpu.memory_space<vmem>>, vector<2x32xf32>
      %c1_i32_25 = arith.constant 1 : i32
      %60 = vector.broadcast %c1_i32_25 : i32 to vector<2x1xi32>
      %61 = arith.maxsi %58, %60 : vector<2x1xi32>
      %62 = arith.sitofp %61 : vector<2x1xi32> to vector<2x1xf32>
      %63 = vector.broadcast %62 : vector<2x1xf32> to vector<2x32xf32>
      %64 = arith.divf %59, %63 : vector<2x32xf32>
      %c0_26 = arith.constant 0 : index
      %c0_27 = arith.constant 0 : index
      %65 = vector.load %arg6[%c0_26, %c0_27] : memref<2x32xf32, #tpu.memory_space<vmem>>, vector<2x32xf32>
      tpu.vector_store %arg6[%c0_26, %c0_27], %64 {strides = array<i32>} : memref<2x32xf32, #tpu.memory_space<vmem>>, vector<2x32xf32>,
      %c0_28 = arith.constant 0 : index
      %c0_29 = arith.constant 0 : index
      %66 = vector.load %arg4[%c0_28, %c0_29] : memref<32x4xf32, #tpu.memory_space<vmem>>, vector<32x4xf32>
      %cst_30 = arith.constant dense<0.000000e+00> : vector<2x4xf32>
      %67 = tpu.matmul %64, %66, %cst_30 {dimension_numbers = #tpu.dot_dimension_numbers<[1], [0], [0], [1], [0, 0, 1, 1], [], []>} : vector<2x32xf32>, vector<32x4xf32>, vector<2x4xf32> -> vector<2x4xf32>
      %c0_31 = arith.constant 0 : index
      %c0_32 = arith.constant 0 : index
      %68 = vector.load %arg5[%c0_31, %c0_32] : memref<1x4xf32, #tpu.memory_space<vmem>>, vector<1x4xf32>
      %69 = vector.broadcast %68 : vector<1x4xf32> to vector<2x4xf32>
      %70 = arith.addf %67, %69 : vector<2x4xf32>
      %c0_33 = arith.constant 0 : index
      %c0_34 = arith.constant 0 : index
      %71 = vector.load %arg7[%c0_33, %c0_34] : memref<2x4xf32, #tpu.memory_space<vmem>>, vector<2x4xf32>
      tpu.vector_store %arg7[%c0_33, %c0_34], %70 {strides = array<i32>} : memref<2x4xf32, #tpu.memory_space<vmem>>, vector<2x4xf32>,
    } else {
    }
    return
  }
  func.func @transform_0(%arg0: i32, %arg1: i32, %arg2: memref<2xi32, #tpu.memory_space<smem>>) -> (i32, i32, i32) {
    %c0_i32 = arith.constant 0 : i32
    %c0_i32_0 = arith.constant 0 : i32
    return %arg0, %arg1, %c0_i32 : i32, i32, i32
  }
  func.func @transform_1(%arg0: i32, %arg1: i32, %arg2: memref<2xi32, #tpu.memory_space<smem>>) -> (i32, i32) {
    %c0_i32 = arith.constant 0 : i32
    %c0_i32_0 = arith.constant 0 : i32
    %c0_i32_1 = arith.constant 0 : i32
    return %c0_i32, %c0_i32_0 : i32, i32
  }
  func.func @transform_2(%arg0: i32, %arg1: i32, %arg2: memref<2xi32, #tpu.memory_space<smem>>) -> (i32, i32) {
    %c0_i32 = arith.constant 0 : i32
    %c0_i32_0 = arith.constant 0 : i32
    %c0_i32_1 = arith.constant 0 : i32
    return %c0_i32, %c0_i32_0 : i32, i32
  }
  func.func @transform_3(%arg0: i32, %arg1: i32, %arg2: memref<2xi32, #tpu.memory_space<smem>>) -> (i32, i32) {
    %c0_i32 = arith.constant 0 : i32
    %c0_i32_0 = arith.constant 0 : i32
    return %arg0, %c0_i32 : i32, i32
  }
  func.func @transform_4(%arg0: i32, %arg1: i32, %arg2: memref<2xi32, #tpu.memory_space<smem>>) -> (i32, i32) {
    %c0_i32 = arith.constant 0 : i32
    %c0_i32_0 = arith.constant 0 : i32
    return %arg0, %c0_i32 : i32, i32
  }
}

</mosaic_0001>

<llo_original>
// kernel: _forward_core.1
$region0: #{_forward_core.1}
  #allocation0 [shape = 'u32[]', space=smem, size = 0x4, offset = 0x4, fixed_abs, tag = 'smem constant byte address 0x4 - core index']
  #allocation1 [shape = 'u32[144,128]{1,0:T(1,128)}', space=vmem, size = 0x12000, scoped, tag = 'internal scratch']
  #allocation2 [shape = 'f32[2,32]{1,0:T(2,128)}', space=vmem, size = 0x400, scoped, tag = 'scratch operand']
  #allocation3 [shape = 's32[1]{0}', space=sflag, size = 0x4, scoped, tag = 'scoped memory for _forward_core.1']
  #allocation4 [shape = 'u8[512]{0}', space=smem, size = 0x200, scoped, tag = 'prefetched SMEM operand 0']
  %s0 = inlined_call_operand.vmem [shape: s32[2], index: 0, kind: input, shape index: {}]
  %s1 = inlined_call_operand.vmem [shape: f32[2,16,32], index: 1, kind: input, shape index: {}]
  %s2 = inlined_call_operand.vmem [shape: f32[32,4], index: 2, kind: input, shape index: {}]
  %s3 = inlined_call_operand.vmem [shape: f32[1,4], index: 3, kind: input, shape index: {}]
  %s4 = inlined_call_operand.hbm [shape: f32[2,32], index: 4, kind: output, shape index: {0}]
  %s5 = inlined_call_operand.hbm [shape: f32[2,4], index: 5, kind: output, shape index: {1}]
  %6 = xla_tuple %s4, %s5
  %s7 = sld [smem:[#allocation0]]
  $region99: #{_forward_core.1} parent=0
    _
  %s9 = ssub.s32 1, %s7
  %s10 = scalar_select 0, %s9, %s7
  %s11 = sshll.u32 %s0, 4
  %s12 = int_to_ptr.vmem [resolvable:$true] %s11
  %14 = dma.vmem_to_smem %s12, 16, [#allocation4], [#allocation3]
  %15 = dma.done [#allocation3], 16
  %16 = sfence
  $region1: #{_forward_core.1} parent=0
    #allocation5 [shape = 'u8[16384]{0}', space=vmem, size = 0x4000, scoped, tag = 'input window, operand 1']
    #allocation6 [shape = 'u8[1024]{0}', space=vmem, size = 0x400, scoped, tag = 'output window, operand 0, single buffered']
    #allocation7 [shape = 's32[2]{0}', space=sflag, size = 0x8, scoped, tag = 'scoped memory for _forward_core.1']
    #allocation8 [shape = 'u8[1024]{0}', space=vmem, size = 0x400, scoped, tag = 'output window, operand 1, single buffered']
    #allocation9 [shape = 's32[1]{0}', space=sflag, size = 0x4, scoped, tag = 'scoped memory for _forward_core.1']
    %17 = vsyncpa [#allocation7], 0
    %18 = vsyncpa [#allocation9], 0
    loop: start=0, step=1, limit=4
    $region2: #{_forward_core.1} parent=1 // loop_pre_header
      _
    $region3: #{_forward_core.1} parent=1 // loop_header
      %s20 = sphi 0, %s24
      %p21 = scmp.ge.s32.totalorder %s20, 4
      %s27 = sphi 0, %s39
      %s28 = sphi 0, %s35
      %s29 = sphi 0, %s27
      %s30 = sphi 0, %s28
      %s31 = sphi 0, %s29
      %s32 = sphi 0, %s30
      %s44 = sphi 0, %s46
      %s47 = sphi 0, %s44
      %s48 = sphi 0, %s47
      %s64 = sphi 0, %s48
      %s68 = sphi 0, %s68
      %s70 = sphi 0, %s68
      %s71 = sphi 0, %s70
      %s85 = sphi 0, %s71
      %s89 = sphi 0, %s89
      %s91 = sphi 0, %s89
      %s92 = sphi 0, %s91
      %s106 = sphi 0, %s92
      %s112 = sphi 0, %s114
      %s115 = sphi 0, %s112
      %s116 = sphi 0, %s115
      %s132 = sphi 0, %s116
      %s138 = sphi 0, %s140
      %s141 = sphi 0, %s138
      %s142 = sphi 0, %s141
      %s158 = sphi 0, %s142
    $region4: #{_forward_core.1} parent=1 // loop_header_branch
      %23 = sbr.rel (%p21) target = $region8
    $region5: #{_forward_core.1} parent=1 // loop_body
      %s25 = ssub.s32 %s20, 1
      %s26 = ssub.s32 %s20, 2
      %s33 = sadd.s32 1, %s28
      %p34 = scmp.ge.s32.totalorder %s33, 2
      %s35 = scalar_select %p34, 0, %s33
      %s36 = sadd.s32 1, %s27
      %s37 = scalar_select %p34, %s36, %s27
      %p38 = scmp.ge.s32.totalorder %s37, 1
      %s39 = scalar_select %p38, 0, %s37
      %s40 = ssub.s32 %s27, %s39
      %s41 = ssub.s32 %s28, %s35
      %s42 = sor.u32 %s40, %s41
      %p43 = scmp.eq.s32.totalorder %s42, 0
      %s45 = sadd.s32 %s44, 1
      %s46 = scalar_select %p43, %s44, %s45
      %p49 = pneg %p43
      %p50 = scmp.eq.s32.totalorder %s20, 1
      %p51 = por %p49, %p50
      %p52 = scmp.ne.s32.totalorder %s44, %s47
      %p53 = scmp.eq.s32.totalorder %s20, 0
      %p54 = por %p52, %p53
      %p55 = scmp.ne.s32.totalorder %s44, %s47
      %p56 = scmp.eq.s32.totalorder %s25, 1
      %p57 = por %p55, %p56
      %p58 = scmp.ne.s32.totalorder %s47, %s48
      %p59 = scmp.eq.s32.totalorder %s25, 0
      %p60 = por %p58, %p59
      %p61 = scmp.ne.s32.totalorder %s47, %s48
      %p62 = scmp.eq.s32.totalorder %s26, 1
      %p63 = por %p61, %p62
      %p65 = scmp.ne.s32.totalorder %s48, %s64
      %p66 = scmp.eq.s32.totalorder %s26, 0
      %p67 = por %p65, %p66
      %s69 = sadd.s32 %s68, 1
      %p72 = scmp.eq.s32.totalorder %s20, 1
      %p73 = scmp.ne.s32.totalorder %s68, %s70
      %p74 = scmp.eq.s32.totalorder %s20, 0
      %p75 = por %p73, %p74
      %p76 = scmp.ne.s32.totalorder %s68, %s70
      %p77 = scmp.eq.s32.totalorder %s25, 1
      %p78 = por %p76, %p77
      %p79 = scmp.ne.s32.totalorder %s70, %s71
      %p80 = scmp.eq.s32.totalorder %s25, 0
      %p81 = por %p79, %p80
      %p82 = scmp.ne.s32.totalorder %s70, %s71
      %p83 = scmp.eq.s32.totalorder %s26, 1
      %p84 = por %p82, %p83
      %p86 = scmp.ne.s32.totalorder %s71, %s85
      %p87 = scmp.eq.s32.totalorder %s26, 0
      %p88 = por %p86, %p87
      %s90 = sadd.s32 %s89, 1
      %p93 = scmp.eq.s32.totalorder %s20, 1
      %p94 = scmp.ne.s32.totalorder %s89, %s91
      %p95 = scmp.eq.s32.totalorder %s20, 0
      %p96 = por %p94, %p95
      %p97 = scmp.ne.s32.totalorder %s89, %s91
      %p98 = scmp.eq.s32.totalorder %s25, 1
      %p99 = por %p97, %p98
      %p100 = scmp.ne.s32.totalorder %s91, %s92
      %p101 = scmp.eq.s32.totalorder %s25, 0
      %p102 = por %p100, %p101
      %p103 = scmp.ne.s32.totalorder %s91, %s92
      %p104 = scmp.eq.s32.totalorder %s26, 1
      %p105 = por %p103, %p104
      %p107 = scmp.ne.s32.totalorder %s92, %s106
      %p108 = scmp.eq.s32.totalorder %s26, 0
      %p109 = por %p107, %p108
      %s110 = ssub.s32 %s27, %s39
      %p111 = scmp.eq.s32.totalorder %s110, 0
      %s113 = sadd.s32 %s112, 1
      %s114 = scalar_select %p111, %s112, %s113
      %p117 = pneg %p111
      %p118 = scmp.eq.s32.totalorder %s20, 1
      %p119 = por %p117, %p118
      %p120 = scmp.ne.s32.totalorder %s112, %s115
      %p121 = scmp.eq.s32.totalorder %s20, 0
      %p122 = por %p120, %p121
      %p123 = scmp.ne.s32.totalorder %s112, %s115
      %p124 = scmp.eq.s32.totalorder %s25, 1
      %p125 = por %p123, %p124
      %p126 = scmp.ne.s32.totalorder %s115, %s116
      %p127 = scmp.eq.s32.totalorder %s25, 0
      %p128 = por %p126, %p127
      %p129 = scmp.ne.s32.totalorder %s115, %s116
      %p130 = scmp.eq.s32.totalorder %s26, 1
      %p131 = por %p129, %p130
      %p133 = scmp.ne.s32.totalorder %s116, %s132
      %p134 = scmp.eq.s32.totalorder %s26, 0
      %p135 = por %p133, %p134
      %s136 = ssub.s32 %s27, %s39
      %p137 = scmp.eq.s32.totalorder %s136, 0
      %s139 = sadd.s32 %s138, 1
      %s140 = scalar_select %p137, %s138, %s139
      %p143 = pneg %p137
      %p144 = scmp.eq.s32.totalorder %s20, 1
      %p145 = por %p143, %p144
      %p146 = scmp.ne.s32.totalorder %s138, %s141
      %p147 = scmp.eq.s32.totalorder %s20, 0
      %p148 = por %p146, %p147
      %p149 = scmp.ne.s32.totalorder %s138, %s141
      %p150 = scmp.eq.s32.totalorder %s25, 1
      %p151 = por %p149, %p150
      %p152 = scmp.ne.s32.totalorder %s141, %s142
      %p153 = scmp.eq.s32.totalorder %s25, 0
      %p154 = por %p152, %p153
      %p155 = scmp.ne.s32.totalorder %s141, %s142
      %p156 = scmp.eq.s32.totalorder %s26, 1
      %p157 = por %p155, %p156
      %p159 = scmp.ne.s32.totalorder %s142, %s158
      %p160 = scmp.eq.s32.totalorder %s26, 0
      %p161 = por %p159, %p160
      %p162 = scmp.le.s32.totalorder 1, %s20
      %p163 = scmp.lt.s32.totalorder %s20, 3
      %p164 = pnand %p162, %p163
      %p165 = pneg %p164
      // Predicated region
      $region9: #{_forward_core.1} parent=5 // pred_check
        _
      $region10: #{_forward_core.1} parent=5 // pred_check_branch
        %167 = sbr.rel (%p164) target = $region12
      $region11: #{_forward_core.1} parent=5 // pred_region
        %s168 = ssub.s32 %s20, 1
        // Predicated region
        $region13: #{_forward_core.1} parent=11 // pred_check
          %p169 = pneg %p81
        $region14: #{_forward_core.1} parent=11 // pred_check_branch
          %171 = sbr.rel (%p169) target = $region16
        $region15: #{_forward_core.1} parent=11 // pred_region
          _
        $region16: #{_forward_core.1} parent=11 // pred_fallthru
          _
        // Predicated region
        $region17: #{_forward_core.1} parent=11 // pred_check
          %p172 = pneg %p102
        $region18: #{_forward_core.1} parent=11 // pred_check_branch
          %174 = sbr.rel (%p172) target = $region20
        $region19: #{_forward_core.1} parent=11 // pred_region
          _
        $region20: #{_forward_core.1} parent=11 // pred_fallthru
          _
      $region12: #{_forward_core.1} parent=5 // pred_fallthru
        _
      %p175 = scmp.lt.s32.totalorder %s20, 2
      // Predicated region
      $region21: #{_forward_core.1} parent=5 // pred_check
        %p176 = pneg %p175
      $region22: #{_forward_core.1} parent=5 // pred_check_branch
        %178 = sbr.rel (%p176) target = $region24
      $region23: #{_forward_core.1} parent=5 // pred_region
        // Predicated region
        $region25: #{_forward_core.1} parent=23 // pred_check
          %p179 = pneg %p54
        $region26: #{_forward_core.1} parent=23 // pred_check_branch
          %181 = sbr.rel (%p179) target = $region28
        $region27: #{_forward_core.1} parent=23 // pred_region
          %s182 = sand.u32 %s44, 1
          %s183 = sand.u32 %s44, 1
          %s184 = smul.addr %s183, 16
          %s185 = scalar_lea.vmem [#allocation5], %s184
          %s186 = smul.u32 2, %s27
          %s187 = smul.addr %s186, 2
          %s188 = sadd.s32 %s28, %s187
          %s189 = smul.addr %s188, 8
          %s190 = scalar_lea.vmem %s1, %s189
          // Predicated region
          $region29: #{_forward_core.1} parent=27 // pred_check
            _
          $region30: #{_forward_core.1} parent=27 // pred_check_branch
            %192 = sbr.rel (0) target = $region32
          $region31: #{_forward_core.1} parent=27 // pred_region
            // Predicated region
            $region33: #{_forward_core.1} parent=31 // pred_check
              _
            $region34: #{_forward_core.1} parent=31 // pred_check_branch
              %194 = sbr.rel (0) target = $region36
            $region35: #{_forward_core.1} parent=31 // pred_region
              // Predicated region
              $region48: #{_forward_core.1} parent=35 // pred_check
                _
              $region49: #{_forward_core.1} parent=35 // pred_check_branch
                %212 = sbr.rel (0) target = $region51
              $region50: #{_forward_core.1} parent=35 // pred_region
                loop: start=0, step=1, limit=1
                $region52: #{_forward_core.1} parent=50 // loop_pre_header
                  _
                $region53: #{_forward_core.1} parent=50 // loop_header
                  %s214 = sphi 0, %s218
                  %p215 = scmp.ge.s32.totalorder %s214, 1
                  %s219 = sphi %s190, %s190
                  %s220 = sphi %s185, %s185
                $region54: #{_forward_core.1} parent=50 // loop_header_branch
                  %217 = sbr.rel (%p215) target = $region58
                $region55: #{_forward_core.1} parent=50 // loop_body
                  %v221 = vld [vmem:[%s219] sm:$0xff]
                  %222 = vst [vmem:[%s220] sm:$0xff] %v221
                  %v223 = vld [vmem:[%s219 + $0x10] sm:$0xff]
                  %224 = vst [vmem:[%s220 + $0x8] sm:$0xff] %v223
                $region56: #{_forward_core.1} parent=50 // loop_footer
                  %s218 = sadd.s32 1, %s214
                $region57: #{_forward_core.1} parent=50 // loop_footer_branch
                  %213 = sbr.rel target = $region53
                $region58: #{_forward_core.1} parent=50 // loop_exit
                  _
              $region51: #{_forward_core.1} parent=35 // pred_fallthru
                _
              // Predicated region
              $region59: #{_forward_core.1} parent=35 // pred_check
                _
              $region60: #{_forward_core.1} parent=35 // pred_check_branch
                %226 = sbr.rel target = $region62
              $region61: #{_forward_core.1} parent=35 // pred_region
                _
              $region62: #{_forward_core.1} parent=35 // pred_fallthru
                _
            $region36: #{_forward_core.1} parent=31 // pred_fallthru
              _
            // Predicated region
            $region37: #{_forward_core.1} parent=31 // pred_check
              _
            $region38: #{_forward_core.1} parent=31 // pred_check_branch
              %196 = sbr.rel target = $region40
            $region39: #{_forward_core.1} parent=31 // pred_region
              %s198 = ssub.s32 256, 1
              loop: start=0, step=1, limit=1
              $region41: #{_forward_core.1} parent=39 // loop_pre_header
                _
              $region42: #{_forward_core.1} parent=39 // loop_header
                %s200 = sphi 0, %s204
                %p201 = scmp.ge.s32.totalorder %s200, 1
                %s205 = sphi %s190, %s190
                %s206 = sphi %s185, %s185
              $region43: #{_forward_core.1} parent=39 // loop_header_branch
                %203 = sbr.rel (%p201) target = $region47
              $region44: #{_forward_core.1} parent=39 // loop_body
                %v207 = vld [vmem:[%s205] sm:%s198]
                %208 = vst [vmem:[%s206] sm:%s198] %v207
                %v209 = vld [vmem:[%s205 + $0x10] sm:%s198]
                %210 = vst [vmem:[%s206 + $0x8] sm:%s198] %v209
              $region45: #{_forward_core.1} parent=39 // loop_footer
                %s204 = sadd.s32 1, %s200
              $region46: #{_forward_core.1} parent=39 // loop_footer_branch
                %199 = sbr.rel target = $region42
              $region47: #{_forward_core.1} parent=39 // loop_exit
                _
            $region40: #{_forward_core.1} parent=31 // pred_fallthru
              _
          $region32: #{_forward_core.1} parent=27 // pred_fallthru
            _
          %227 = vnop
        $region28: #{_forward_core.1} parent=23 // pred_fallthru
          _
      $region24: #{_forward_core.1} parent=5 // pred_fallthru
        _
      %p228 = scmp.le.s32.totalorder 1, %s20
      %p229 = scmp.lt.s32.totalorder %s20, 3
      %p230 = pnand %p228, %p229
      %p231 = pneg %p230
      // Predicated region
      $region63: #{_forward_core.1} parent=5 // pred_check
        _
      $region64: #{_forward_core.1} parent=5 // pred_check_branch
        %233 = sbr.rel (%p230) target = $region66
      $region65: #{_forward_core.1} parent=5 // pred_region
        %s234 = ssub.s32 %s20, 1
        %s235 = sand.u32 %s47, 1
        %s236 = sand.u32 %s47, 1
        %s237 = smul.addr %s236, 16
        %s238 = scalar_lea.vmem [#allocation5], %s237
        // Predicated region
        $region67: #{_forward_core.1} parent=65 // pred_check
          %p239 = pneg %p60
        $region68: #{_forward_core.1} parent=65 // pred_check_branch
          %241 = sbr.rel (%p239) target = $region70
        $region69: #{_forward_core.1} parent=65 // pred_region
          _
        $region70: #{_forward_core.1} parent=65 // pred_fallthru
          _
        %s242 = sand.u32 %s47, 1
        %s243 = sand.u32 %s47, 1
        %s244 = smul.addr %s243, 16
        %s245 = scalar_lea.vmem [#allocation5], %s244
        %p246 = pneg %p60
        %p247 = pneg %p57
        %p248 = pneg %p81
        %p249 = pneg %p78
        %p250 = pneg %p102
        %p251 = pneg %p99
        %p252 = pneg %p128
        %p253 = pneg %p125
        %p254 = pneg %p154
        %p255 = pneg %p151
        %s256 = smul.u32 2, %s29
        %p257 = scmp.eq.s32.totalorder %s30, 0
        // Predicated region
        $region71: #{_forward_core.1} parent=65 // pred_check
          %p258 = pneg %p257
        $region72: #{_forward_core.1} parent=65 // pred_check_branch
          %260 = sbr.rel (%p258) target = $region74
        $region73: #{_forward_core.1} parent=65 // pred_region
          %vm261 = vcmask 254976
          %262 = vst.msk [vmem:[#allocation2] sm:$0x3] %vm261, 0.0
        $region74: #{_forward_core.1} parent=65 // pred_fallthru
          _
        %v263 = vlaneseq
        %v264 = vshrl.u32 %v263, 7
        %s265 = smul.u32 %s30, 8
        %v266 = vstv %s265
        %v267 = vadd.s32 %v264, %v266
        %s268 = smul.u32 %s29, 2
        %s269 = sld [smem:[#allocation4 + %s268]]
        %v270 = vstv %s269
        %s271 = sadd.s32 %s268, 1
        %s272 = sld [smem:[#allocation4 + %s271]]
        %v273 = vstv %s272
        %vm274 = vcmp.ge.s32.totalorder %v267, 1
        %vm275 = vcmp.le.s32.totalorder %v267, %v270
        %vm276 = vcmp.le.s32.totalorder %v267, %v273
        %vm277 = vmand %vm274, %vm275
        %vm278 = vmand %vm274, %vm276
        %v279 = vld [vmem:[#allocation2] sm:$0x3]
        %v280 = vld [vmem:[%s238] sm:$0xff]
        %v281 = vld [vmem:[%s238 + $0x8] sm:$0xff]
        %v282 = vsel %vm277, 1, 0
        %v283 = vsel %vm278, 1, 0
        %vm284 = vcmp.eq.s32.totalorder %v282, 1
        %vm285 = vcmp.eq.s32.totalorder %v283, 1
        %v286 = vsel %vm284, %v280, 0.0
        %v287 = vsel %vm285, %v281, 0.0
        %vm288 = vcmask 261120
        %v289 = vsel %vm288, %v286, 0.0
        %v290 = vrot.slane %v289, 4
        %v291 = vadd.f32 %v289, %v290
        %v292 = vrot.slane %v291, 2
        %v293 = vadd.f32 %v291, %v292
        %v294 = vrot.slane %v293, 1
        %v295 = vadd.f32 %v293, %v294
        %v296 = vsel %vm288, %v287, 0.0
        %v297 = vrot.slane %v296, 4
        %v298 = vadd.f32 %v296, %v297
        %v299 = vrot.slane %v298, 2
        %v300 = vadd.f32 %v298, %v299
        %v301 = vrot.slane %v300, 1
        %v302 = vadd.f32 %v300, %v301
        %vm305 = vcmask 1041409
        %v306 = vsel %vm305, %v302, %v295
        %v308 = vadd.f32 %v279, %v306
        %vm309 = vcmask 254976
        %310 = vst.msk [vmem:[#allocation2] sm:$0x3] %vm309, %v308
        %p311 = scmp.eq.s32.totalorder %s30, 1
        // Predicated region
        $region75: #{_forward_core.1} parent=65 // pred_check
          %p312 = pneg %p311
        $region76: #{_forward_core.1} parent=65 // pred_check_branch
          %314 = sbr.rel (%p312) target = $region78
        $region77: #{_forward_core.1} parent=65 // pred_region
          %vm315 = vcmp.eq.s32.totalorder %v264, 0
          %s316 = sld [smem:[#allocation4 + %s268]]
          %v317 = vstv %s316
          %v318 = vsel %vm315, %v317, 0
          %vm319 = vcmp.eq.s32.totalorder %v264, 1
          %s320 = sld [smem:[#allocation4 + %s271]]
          %v321 = vstv %s320
          %v322 = vsel %vm319, %v321, %v318
          %v323 = vld [vmem:[#allocation2] sm:$0x3]
          %vm324 = vcmp.gt.s32.totalorder %v322, 1
          %v325 = vsel %vm324, %v322, 1
          %v326 = vcvt.s32.f32 %v325
          %v327 = vrcp.pop %v326
          %v328 = vmul.f32 %v323, %v327
          %329 = vst.msk [vmem:[#allocation6] sm:$0x3] %vm309, %v328
          %v330 = vld [vmem:[%s2] sm:$0xff]
          %v331 = vld [vmem:[%s2 + $0x8] sm:$0xff]
          %v332 = vld [vmem:[%s2 + $0x10] sm:$0xff]
          %v333 = vld [vmem:[%s2 + $0x18] sm:$0xff]
          %v334 = vld [vmem:[%s3] sm:$0x1]
          %v336 = vlaneseq
          %v337 = vshrl.u32 %v336, 7
          %v338 = vsub.s32 0, %v337
          %v339 = vrot.slane %v334, %v338
          %v342 = vsel %vm288, %v328, 0
          %344 = vmatprep.subr.mxu0 0.0
          %345 = vmatpush1.msra.mxu0 0.0
          %346 = vmatprep.subr.mxu0 0.0
          %347 = vmatpush1.msra.mxu0 0.0
          %348 = vmatprep.subr.mxu0 0.0
          %349 = vmatpush1.msra.mxu0 0.0
          %350 = vmatprep.subr.mxu0 0.0
          %351 = vmatpush1.msra.mxu0 0.0
          %352 = vmatprep.subr.mxu0 0.0
          %353 = vmatpush1.msra.mxu0 0.0
          %354 = vmatprep.subr.mxu0 0.0
          %355 = vmatpush1.msra.mxu0 0.0
          %356 = vmatprep.subr.mxu0 0.0
          %357 = vmatpush1.msra.mxu0 0.0
          %358 = vmatprep.subr.mxu0 0.0
          %359 = vmatpush1.msra.mxu0 0.0
          %360 = vmatprep.subr.mxu0 0.0
          %361 = vmatpush1.msra.mxu0 0.0
          %362 = vmatprep.subr.mxu0 0.0
          %363 = vmatpush1.msra.mxu0 0.0
          %364 = vmatprep.subr.mxu0 0.0
          %365 = vmatpush1.msra.mxu0 0.0
          %366 = vmatprep.subr.mxu0 0.0
          %367 = vmatpush1.msra.mxu0 0.0
          %368 = vmatprep.subr.mxu0 0.0
          %369 = vmatpush1.msra.mxu0 %v333
          %370 = vmatprep.subr.mxu0 0.0
          %371 = vmatpush1.msra.mxu0 %v332
          %372 = vmatprep.subr.mxu0 0.0
          %373 = vmatpush1.msra.mxu0 %v331
          %374 = vmatprep.subr.mxu0 0.0
          %375 = vmatpush1.msra.mxu0 %v330
          %376 = vmatprep.subr.mxu0 0.0
          %377 = vmatpush2.msra.mxu0 0.0
          %378 = vmatprep.subr.mxu0 0.0
          %379 = vmatpush2.msra.mxu0 0.0
          %380 = vmatprep.subr.mxu0 0.0
          %381 = vmatpush2.msra.mxu0 0.0
          %382 = vmatprep.subr.mxu0 0.0
          %383 = vmatpush2.msra.mxu0 0.0
          %384 = vmatprep.subr.mxu0 0.0
          %385 = vmatpush2.msra.mxu0 0.0
          %386 = vmatprep.subr.mxu0 0.0
          %387 = vmatpush2.msra.mxu0 0.0
          %388 = vmatprep.subr.mxu0 0.0
          %389 = vmatpush2.msra.mxu0 0.0
          %390 = vmatprep.subr.mxu0 0.0
          %391 = vmatpush2.msra.mxu0 0.0
          %392 = vmatprep.subr.mxu0 0.0
          %393 = vmatpush2.msra.mxu0 0.0
          %394 = vmatprep.subr.mxu0 0.0
          %395 = vmatpush2.msra.mxu0 0.0
          %396 = vmatprep.subr.mxu0 0.0
          %397 = vmatpush2.msra.mxu0 0.0
          %398 = vmatprep.subr.mxu0 0.0
          %399 = vmatpush2.msra.mxu0 0.0
          %400 = vmatprep.subr.mxu0 0.0
          %401 = vmatpush2.msra.mxu0 0.0
          %402 = vmatprep.subr.mxu0 0.0
          %403 = vmatpush2.msra.mxu0 0.0
          %404 = vmatprep.subr.mxu0 0.0
          %405 = vmatpush2.msra.mxu0 0.0
          %406 = vmatprep.subr.mxu0 0.0
          %407 = vmatpush2.msra.mxu0 0.0
          %408 = vmatprep.mubr.f32.mxu0 0.0
          %409 = vmatmul.mubr.f32.gmra.mxu0 %v342
          %v410 = vpop.f32.mrf.mxu0
          %v411 = vadd.f32 %v339, %v410
          %v412 = vpop.f32.mrf.mxu0
          %413 = vdwg.mxu0
          %vm414 = vcmask 25600
          %415 = vst.msk [vmem:[#allocation8] sm:$0x3] %vm414, %v411
        $region78: #{_forward_core.1} parent=65 // pred_fallthru
          _
        // Predicated region
        $region79: #{_forward_core.1} parent=65 // pred_check
          %p416 = pneg %p125
        $region80: #{_forward_core.1} parent=65 // pred_check_branch
          %418 = sbr.rel (%p416) target = $region82
        $region81: #{_forward_core.1} parent=65 // pred_region
          %s420 = ssub.s32 32, 32
          %421 = vsyncadd [#allocation7], %s420
          %s422 = smul.addr %s29, 32
          %s423 = scalar_lea.hbm %s4, %s422
          %s425 = sshll.u32 [#allocation6], 4
          %s426 = int_to_ptr.vmem [resolvable:$true] %s425
          %428 = dma.vmem_to_hbm [thread:$0]  %s426, 32, %s423, [#allocation7]
        $region82: #{_forward_core.1} parent=65 // pred_fallthru
          _
        // Predicated region
        $region83: #{_forward_core.1} parent=65 // pred_check
          %p429 = pneg %p151
        $region84: #{_forward_core.1} parent=65 // pred_check_branch
          %431 = sbr.rel (%p429) target = $region86
        $region85: #{_forward_core.1} parent=65 // pred_region
          %s433 = ssub.s32 32, 32
          %434 = vsyncadd [#allocation9], %s433
          %s435 = smul.addr %s29, 32
          %s436 = scalar_lea.hbm %s5, %s435
          %s438 = sshll.u32 [#allocation8], 4
          %s439 = int_to_ptr.vmem [resolvable:$true] %s438
          %441 = dma.vmem_to_hbm [thread:$0]  %s439, 32, %s436, [#allocation9]
        $region86: #{_forward_core.1} parent=65 // pred_fallthru
          _
        // Predicated region
        $region87: #{_forward_core.1} parent=65 // pred_check
          %p442 = pneg %p125
        $region88: #{_forward_core.1} parent=65 // pred_check_branch
          %444 = sbr.rel (%p442) target = $region90
        $region89: #{_forward_core.1} parent=65 // pred_region
          %445 = dma.done [#allocation7], 32
        $region90: #{_forward_core.1} parent=65 // pred_fallthru
          _
        // Predicated region
        $region91: #{_forward_core.1} parent=65 // pred_check
          %p446 = pneg %p151
        $region92: #{_forward_core.1} parent=65 // pred_check_branch
          %448 = sbr.rel (%p446) target = $region94
        $region93: #{_forward_core.1} parent=65 // pred_region
          %449 = dma.done [#allocation9], 32
        $region94: #{_forward_core.1} parent=65 // pred_fallthru
          _
      $region66: #{_forward_core.1} parent=5 // pred_fallthru
        _
      %p450 = scmp.le.s32.totalorder 2, %s20
      // Predicated region
      $region95: #{_forward_core.1} parent=5 // pred_check
        %p451 = pneg %p450
      $region96: #{_forward_core.1} parent=5 // pred_check_branch
        %453 = sbr.rel (%p451) target = $region98
      $region97: #{_forward_core.1} parent=5 // pred_region
        %s454 = ssub.s32 %s20, 2
      $region98: #{_forward_core.1} parent=5 // pred_fallthru
        _
    $region6: #{_forward_core.1} parent=1 // loop_footer
      %s24 = sadd.s32 1, %s20
    $region7: #{_forward_core.1} parent=1 // loop_footer_branch
      %19 = sbr.rel target = $region3
    $region8: #{_forward_core.1} parent=1 // loop_exit
      _
    %455 = vsyncpa [#allocation7], 1
    %s456 = scalar_lea.sflag [#allocation7], 1
    %457 = vsyncpa %s456, 1
    %458 = vsyncpa [#allocation9], 1

</llo_original>
